<compile_context>
chip_gen: v7x
topology: tpu7x:2x2x1
jax: 0.10.0
libtpu: 0.0.40
codegen_flags: <defaults>
</compile_context>

<pallas_src>
import jax
import jax.numpy as jnp
from jax.experimental import pallas as pl
from jax.experimental.pallas import tpu as pltpu

EPS = 1e-5


def _stats_kernel(x_ref, w_ref, part_ref):
    # x_ref:    (1, Cin, TM)   NCHW slab, spatial on lanes
    # w_ref:    (Cout, Cin)    1x1 conv weight
    # part_ref: (1, 1, Cout, 2) per-tile partial [sum, sumsq] per channel
    y = jnp.dot(w_ref[...], x_ref[0], preferred_element_type=jnp.float32)  # (Cout, TM)
    s = jnp.sum(y, axis=1, keepdims=True)          # (Cout, 1)
    sq = jnp.sum(y * y, axis=1, keepdims=True)     # (Cout, 1)
    part_ref[0, 0] = jnp.concatenate([s, sq], axis=1)


def _norm_kernel(x_ref, w_ref, a_ref, b_ref, o_ref):
    # x_ref: (1, Cin, TM); w_ref: (Cout, Cin); a_ref/b_ref: (Cout, 1)
    # o_ref: (1, Cout, TM)
    y = jnp.dot(w_ref[...], x_ref[0], preferred_element_type=jnp.float32)  # (Cout, TM)
    o_ref[0] = (y * a_ref[...] + b_ref[...]).astype(o_ref.dtype)


def _choose_tile(hw):
    for tm in (2048, 1024, 512, 256, 128):
        if hw % tm == 0:
            return tm
    return hw  # fall back to full-extent block (allowed even if not 128-aligned)


def mapping_forward(x_nchw, conv_w, gamma, beta):
    """x_nchw: (N, Cin, H, W); conv_w: (Cout, Cin, 1, 1); gamma/beta: (Cout,)."""
    N, Cin, H, W = x_nchw.shape
    Cout = conv_w.shape[0]
    HW = H * W
    M = N * HW
    TM = _choose_tile(HW)
    nT = HW // TM

    x3 = x_nchw.reshape(N, Cin, HW)                      # free: contiguous view
    w = conv_w.reshape(Cout, Cin).astype(x_nchw.dtype)   # (Cout, Cin)

    itemsize = jnp.dtype(x_nchw.dtype).itemsize
    flops = 2 * M * Cin * Cout
    x_bytes = N * Cin * HW * itemsize
    w_bytes = Cout * Cin * itemsize

    # ---- pass 1: partial per-channel sum / sum-of-squares ------------------
    part = pl.pallas_call(
        _stats_kernel,
        out_shape=jax.ShapeDtypeStruct((N, nT, Cout, 2), jnp.float32),
        grid=(N, nT),
        in_specs=[
            pl.BlockSpec((1, Cin, TM), lambda n, t: (n, 0, t)),
            pl.BlockSpec((Cout, Cin), lambda n, t: (0, 0)),
        ],
        out_specs=pl.BlockSpec((1, 1, Cout, 2), lambda n, t: (n, t, 0, 0)),
        compiler_params=pltpu.CompilerParams(
            dimension_semantics=("parallel", "parallel")),
        cost_estimate=pl.CostEstimate(
            flops=flops, transcendentals=0,
            bytes_accessed=x_bytes + w_bytes + N * nT * Cout * 2 * 4),
    )(x3, w)

    # Tiny reduction + folded BN affine, done once per channel in plain JAX.
    stats = jnp.sum(part, axis=(0, 1))                   # (Cout, 2)
    mean = stats[:, 0] / M
    var = stats[:, 1] / M - mean * mean                  # biased variance
    a = gamma.astype(jnp.float32) * jax.lax.rsqrt(var + EPS)
    b = beta.astype(jnp.float32) - mean * a
    a2 = a.reshape(Cout, 1)
    b2 = b.reshape(Cout, 1)

    # ---- pass 2: recompute y per tile and apply fused per-channel FMA ------
    out3 = pl.pallas_call(
        _norm_kernel,
        out_shape=jax.ShapeDtypeStruct((N, Cout, HW), x_nchw.dtype),
        grid=(N, nT),
        in_specs=[
            pl.BlockSpec((1, Cin, TM), lambda n, t: (n, 0, t)),
            pl.BlockSpec((Cout, Cin), lambda n, t: (0, 0)),
            pl.BlockSpec((Cout, 1), lambda n, t: (0, 0)),
            pl.BlockSpec((Cout, 1), lambda n, t: (0, 0)),
        ],
        out_specs=pl.BlockSpec((1, Cout, TM), lambda n, t: (n, 0, t)),
        compiler_params=pltpu.CompilerParams(
            dimension_semantics=("parallel", "parallel")),
        cost_estimate=pl.CostEstimate(
            flops=flops, transcendentals=0,
            bytes_accessed=x_bytes + w_bytes + N * Cout * HW * itemsize),
    )(x3, w, a2, b2)

    return out3.reshape(N, Cout, H, W)


def _reference(x_nchw, conv_w, gamma, beta):
    N, Cin, H, W = x_nchw.shape
    Cout = conv_w.shape[0]
    x_flat = jnp.transpose(x_nchw, (0, 2, 3, 1)).reshape(-1, Cin).astype(jnp.float32)
    w_t = conv_w.reshape(Cout, Cin).T.astype(jnp.float32)
    y = x_flat @ w_t
    mean = y.mean(axis=0, keepdims=True)
    var = ((y - mean) ** 2).mean(axis=0, keepdims=True)
    out = (y - mean) / jnp.sqrt(var + EPS) * gamma[None, :] + beta[None, :]
    return jnp.transpose(out.reshape(N, H, W, Cout), (0, 3, 1, 2)).astype(x_nchw.dtype)


if __name__ == "__main__":
    key = jax.random.PRNGKey(0)
    k_x, k_w = jax.random.split(key)

    N, Cin, H, W = 2, 4, 16, 16
    Cout = 8

    x = jax.random.normal(k_x, (N, Cin, H, W), dtype=jnp.float32)
    conv_w = jax.random.normal(k_w, (Cout, Cin, 1, 1), dtype=jnp.float32) * (1.0 / Cin) ** 0.5
    gamma = jnp.ones((Cout,), dtype=jnp.float32)   # BatchNorm2d default affine init
    beta = jnp.zeros((Cout,), dtype=jnp.float32)

    out = mapping_forward(x, conv_w, gamma, beta)
    out = jax.block_until_ready(out)

    ref = _reference(x, conv_w, gamma, beta)
    assert out.shape == (N, Cout, H, W), out.shape
    assert jnp.allclose(out, ref, atol=1e-4, rtol=1e-4), "mismatch vs reference"

    print("KERNEL_OK")
</pallas_src>

<mosaic_0001>
module attributes {stable_mosaic.version = 11 : i64} {
  func.func @_stats_kernel(%arg0: i32, %arg1: i32, %arg2: memref<1x4x256xf32, #tpu.memory_space<vmem>>, %arg3: memref<8x4xf32, #tpu.memory_space<vmem>>, %arg4: memref<1x1x8x2xf32, #tpu.memory_space<vmem>>) attributes {dimension_semantics = [#tpu.dimension_semantics<parallel>, #tpu.dimension_semantics<parallel>], iteration_bounds = array<i64: 2, 1>, scalar_prefetch = 0 : i64, scratch_operands = 0 : i64, tpu.core_type = #tpu.core_type<tc>, window_params = [{transform_indices = @transform_0, window_bounds = array<i64: 1, 4, 256>}, {pipeline_mode = #tpu.pipeline_mode<synchronous>, transform_indices = @transform_1, window_bounds = array<i64: 8, 4>}, {transform_indices = @transform_2, window_bounds = array<i64: 1, 1, 8, 2>}]} {
    %c0 = arith.constant 0 : index
    %c0_0 = arith.constant 0 : index
    %0 = vector.load %arg3[%c0, %c0_0] : memref<8x4xf32, #tpu.memory_space<vmem>>, vector<8x4xf32>
    %c0_1 = arith.constant 0 : index
    %c0_2 = arith.constant 0 : index
    %c0_3 = arith.constant 0 : index
    %1 = vector.load %arg2[%c0_1, %c0_2, %c0_3] : memref<1x4x256xf32, #tpu.memory_space<vmem>>, vector<1x4x256xf32>
    %2 = vector.shape_cast %1 : vector<1x4x256xf32> to vector<4x256xf32>
    %cst = arith.constant dense<0.000000e+00> : vector<8x256xf32>
    %3 = tpu.matmul %0, %2, %cst {dimension_numbers = #tpu.dot_dimension_numbers<[1], [0], [0], [1], [0, 0, 1, 1], [], []>} : vector<8x4xf32>, vector<4x256xf32>, vector<8x256xf32> -> vector<8x256xf32>
    %cst_4 = arith.constant dense<0.000000e+00> : vector<8xf32>
    %4 = vector.multi_reduction <add>, %3, %cst_4 [1] : vector<8x256xf32> to vector<8xf32>
    %5 = vector.shape_cast %4 : vector<8xf32> to vector<8x1xf32>
    %6 = arith.mulf %3, %3 : vector<8x256xf32>
    %cst_5 = arith.constant dense<0.000000e+00> : vector<8xf32>
    %7 = vector.multi_reduction <add>, %6, %cst_5 [1] : vector<8x256xf32> to vector<8xf32>
    %8 = vector.shape_cast %7 : vector<8xf32> to vector<8x1xf32>
    %9 = tpu.concatenate %5, %8 in 1 : vector<8x1xf32>, vector<8x1xf32> -> vector<8x2xf32>
    %c0_6 = arith.constant 0 : index
    %c0_7 = arith.constant 0 : index
    %c0_8 = arith.constant 0 : index
    %c0_9 = arith.constant 0 : index
    %10 = vector.load %arg4[%c0_6, %c0_7, %c0_8, %c0_9] : memref<1x1x8x2xf32, #tpu.memory_space<vmem>>, vector<1x1x8x2xf32>
    %11 = vector.shape_cast %10 : vector<1x1x8x2xf32> to vector<8x2xf32>
    %12 = vector.shape_cast %9 : vector<8x2xf32> to vector<1x1x8x2xf32>
    tpu.vector_store %arg4[%c0_6, %c0_7, %c0_8, %c0_9], %12 {strides = array<i32>} : memref<1x1x8x2xf32, #tpu.memory_space<vmem>>, vector<1x1x8x2xf32>,
    return
  }
  func.func @transform_0(%arg0: i32, %arg1: i32) -> (i32, i32, i32) {
    %c0_i32 = arith.constant 0 : i32
    %c0_i32_0 = arith.constant 0 : i32
    return %arg0, %c0_i32, %arg1 : i32, i32, i32
  }
  func.func @transform_1(%arg0: i32, %arg1: i32) -> (i32, i32) {
    %c0_i32 = arith.constant 0 : i32
    %c0_i32_0 = arith.constant 0 : i32
    %c0_i32_1 = arith.constant 0 : i32
    return %c0_i32, %c0_i32_0 : i32, i32
  }
  func.func @transform_2(%arg0: i32, %arg1: i32) -> (i32, i32, i32, i32) {
    %c0_i32 = arith.constant 0 : i32
    %c0_i32_0 = arith.constant 0 : i32
    %c0_i32_1 = arith.constant 0 : i32
    return %arg0, %arg1, %c0_i32, %c0_i32_0 : i32, i32, i32, i32
  }
}

</mosaic_0001>

<llo_original>
// kernel: tpu_custom_call.1
$region0: #{tpu_custom_call.1}
  #allocation0 [shape = 'u32[]', space=smem, size = 0x4, offset = 0x4, fixed_abs, tag = 'smem constant byte address 0x4 - core index']
  #allocation1 [shape = 'u32[144,128]{1,0:T(1,128)}', space=vmem, size = 0x12000, scoped, tag = 'internal scratch']
  %s0 = inlined_call_operand.hbm [shape: f32[2,4,256], index: 0, kind: input, shape index: {}]
  %s1 = inlined_call_operand.vmem [shape: f32[8,4], index: 1, kind: input, shape index: {}]
  %s2 = inlined_call_operand.vmem [shape: f32[2,1,8,2], index: 2, kind: output, shape index: {}]
  %s3 = sld [smem:[#allocation0]]
  $region45: #{tpu_custom_call.1} parent=0
    _
  %s5 = ssub.s32 1, %s3
  %s6 = scalar_select 0, %s5, %s3
  $region1: #{tpu_custom_call.1} parent=0
    #allocation2 [shape = 'u8[8192]{0}', space=vmem, size = 0x2000, scoped, tag = 'input window, operand 0']
    #allocation3 [shape = 's32[2]{0}', space=sflag, size = 0x8, scoped, tag = 'scoped memory for tpu_custom_call.1']
    %7 = vsyncpa [#allocation3], 0
    %s8 = scalar_lea.sflag [#allocation3], 1
    %9 = vsyncpa %s8, 0
    loop: start=0, step=1, limit=4
    $region2: #{tpu_custom_call.1} parent=1 // loop_pre_header
      _
    $region3: #{tpu_custom_call.1} parent=1 // loop_header
      %s11 = sphi 0, %s15
      %p12 = scmp.ge.s32.totalorder %s11, 4
      %s18 = sphi 0, %s30
      %s19 = sphi 0, %s26
      %s20 = sphi 0, %s18
      %s21 = sphi 0, %s19
      %s22 = sphi 0, %s20
      %s23 = sphi 0, %s21
      %s35 = sphi 0, %s37
      %s38 = sphi 0, %s35
      %s39 = sphi 0, %s38
      %s55 = sphi 0, %s39
      %s59 = sphi 0, %s59
      %s61 = sphi 0, %s59
      %s62 = sphi 0, %s61
      %s76 = sphi 0, %s62
      %s84 = sphi 0, %s86
      %s87 = sphi 0, %s84
      %s88 = sphi 0, %s87
      %s104 = sphi 0, %s88
    $region4: #{tpu_custom_call.1} parent=1 // loop_header_branch
      %14 = sbr.rel (%p12) target = $region8
    $region5: #{tpu_custom_call.1} parent=1 // loop_body
      %s16 = ssub.s32 %s11, 1
      %s17 = ssub.s32 %s11, 2
      %s24 = sadd.s32 1, %s19
      %p25 = scmp.ge.s32.totalorder %s24, 1
      %s26 = scalar_select %p25, 0, %s24
      %s27 = sadd.s32 1, %s18
      %s28 = scalar_select %p25, %s27, %s18
      %p29 = scmp.ge.s32.totalorder %s28, 2
      %s30 = scalar_select %p29, 0, %s28
      %s31 = ssub.s32 %s18, %s30
      %s32 = ssub.s32 %s19, %s26
      %s33 = sor.u32 %s31, %s32
      %p34 = scmp.eq.s32.totalorder %s33, 0
      %s36 = sadd.s32 %s35, 1
      %s37 = scalar_select %p34, %s35, %s36
      %p40 = pneg %p34
      %p41 = scmp.eq.s32.totalorder %s11, 1
      %p42 = por %p40, %p41
      %p43 = scmp.ne.s32.totalorder %s35, %s38
      %p44 = scmp.eq.s32.totalorder %s11, 0
      %p45 = por %p43, %p44
      %p46 = scmp.ne.s32.totalorder %s35, %s38
      %p47 = scmp.eq.s32.totalorder %s16, 1
      %p48 = por %p46, %p47
      %p49 = scmp.ne.s32.totalorder %s38, %s39
      %p50 = scmp.eq.s32.totalorder %s16, 0
      %p51 = por %p49, %p50
      %p52 = scmp.ne.s32.totalorder %s38, %s39
      %p53 = scmp.eq.s32.totalorder %s17, 1
      %p54 = por %p52, %p53
      %p56 = scmp.ne.s32.totalorder %s39, %s55
      %p57 = scmp.eq.s32.totalorder %s17, 0
      %p58 = por %p56, %p57
      %s60 = sadd.s32 %s59, 1
      %p63 = scmp.eq.s32.totalorder %s11, 1
      %p64 = scmp.ne.s32.totalorder %s59, %s61
      %p65 = scmp.eq.s32.totalorder %s11, 0
      %p66 = por %p64, %p65
      %p67 = scmp.ne.s32.totalorder %s59, %s61
      %p68 = scmp.eq.s32.totalorder %s16, 1
      %p69 = por %p67, %p68
      %p70 = scmp.ne.s32.totalorder %s61, %s62
      %p71 = scmp.eq.s32.totalorder %s16, 0
      %p72 = por %p70, %p71
      %p73 = scmp.ne.s32.totalorder %s61, %s62
      %p74 = scmp.eq.s32.totalorder %s17, 1
      %p75 = por %p73, %p74
      %p77 = scmp.ne.s32.totalorder %s62, %s76
      %p78 = scmp.eq.s32.totalorder %s17, 0
      %p79 = por %p77, %p78
      %s80 = ssub.s32 %s18, %s30
      %s81 = ssub.s32 %s19, %s26
      %s82 = sor.u32 %s80, %s81
      %p83 = scmp.eq.s32.totalorder %s82, 0
      %s85 = sadd.s32 %s84, 1
      %s86 = scalar_select %p83, %s84, %s85
      %p89 = pneg %p83
      %p90 = scmp.eq.s32.totalorder %s11, 1
      %p91 = por %p89, %p90
      %p92 = scmp.ne.s32.totalorder %s84, %s87
      %p93 = scmp.eq.s32.totalorder %s11, 0
      %p94 = por %p92, %p93
      %p95 = scmp.ne.s32.totalorder %s84, %s87
      %p96 = scmp.eq.s32.totalorder %s16, 1
      %p97 = por %p95, %p96
      %p98 = scmp.ne.s32.totalorder %s87, %s88
      %p99 = scmp.eq.s32.totalorder %s16, 0
      %p100 = por %p98, %p99
      %p101 = scmp.ne.s32.totalorder %s87, %s88
      %p102 = scmp.eq.s32.totalorder %s17, 1
      %p103 = por %p101, %p102
      %p105 = scmp.ne.s32.totalorder %s88, %s104
      %p106 = scmp.eq.s32.totalorder %s17, 0
      %p107 = por %p105, %p106
      %p108 = scmp.le.s32.totalorder 1, %s11
      %p109 = scmp.lt.s32.totalorder %s11, 3
      %p110 = pnand %p108, %p109
      %p111 = pneg %p110
      // Predicated region
      $region9: #{tpu_custom_call.1} parent=5 // pred_check
        _
      $region10: #{tpu_custom_call.1} parent=5 // pred_check_branch
        %113 = sbr.rel (%p110) target = $region12
      $region11: #{tpu_custom_call.1} parent=5 // pred_region
        %s114 = ssub.s32 %s11, 1
        // Predicated region
        $region13: #{tpu_custom_call.1} parent=11 // pred_check
          %p115 = pneg %p72
        $region14: #{tpu_custom_call.1} parent=11 // pred_check_branch
          %117 = sbr.rel (%p115) target = $region16
        $region15: #{tpu_custom_call.1} parent=11 // pred_region
          _
        $region16: #{tpu_custom_call.1} parent=11 // pred_fallthru
          _
      $region12: #{tpu_custom_call.1} parent=5 // pred_fallthru
        _
      %p118 = scmp.lt.s32.totalorder %s11, 2
      // Predicated region
      $region17: #{tpu_custom_call.1} parent=5 // pred_check
        %p119 = pneg %p118
      $region18: #{tpu_custom_call.1} parent=5 // pred_check_branch
        %121 = sbr.rel (%p119) target = $region20
      $region19: #{tpu_custom_call.1} parent=5 // pred_region
        // Predicated region
        $region21: #{tpu_custom_call.1} parent=19 // pred_check
          %p122 = pneg %p45
        $region22: #{tpu_custom_call.1} parent=19 // pred_check_branch
          %124 = sbr.rel (%p122) target = $region24
        $region23: #{tpu_custom_call.1} parent=19 // pred_region
          %s125 = sand.u32 %s35, 1
          %s126 = scalar_lea.sflag [#allocation3], %s125
          %s127 = sand.u32 %s35, 1
          %s128 = smul.addr %s127, 8
          %s129 = scalar_lea.vmem [#allocation2], %s128
          %s130 = smul.u32 2, %s19
          %s132 = ssub.s32 128, 128
          %133 = vsyncadd %s126, %s132
          %s134 = smul.addr %s18, 2
          %s135 = sadd.s32 %s130, %s134
          %s136 = smul.addr %s135, 64
          %s137 = scalar_lea.hbm %s0, %s136
          %s139 = sshll.u32 %s129, 4
          %s140 = int_to_ptr.vmem [resolvable:$true] %s139
          %142 = dma.hbm_to_vmem [thread:$0]  %s137, 128, %s140, %s126
        $region24: #{tpu_custom_call.1} parent=19 // pred_fallthru
          _
      $region20: #{tpu_custom_call.1} parent=5 // pred_fallthru
        _
      %p143 = scmp.le.s32.totalorder 1, %s11
      %p144 = scmp.lt.s32.totalorder %s11, 3
      %p145 = pnand %p143, %p144
      %p146 = pneg %p145
      // Predicated region
      $region25: #{tpu_custom_call.1} parent=5 // pred_check
        _
      $region26: #{tpu_custom_call.1} parent=5 // pred_check_branch
        %148 = sbr.rel (%p145) target = $region28
      $region27: #{tpu_custom_call.1} parent=5 // pred_region
        %s149 = ssub.s32 %s11, 1
        %s150 = sand.u32 %s38, 1
        %s151 = scalar_lea.sflag [#allocation3], %s150
        %s152 = sand.u32 %s38, 1
        %s153 = smul.addr %s152, 8
        %s154 = scalar_lea.vmem [#allocation2], %s153
        // Predicated region
        $region29: #{tpu_custom_call.1} parent=27 // pred_check
          %p155 = pneg %p51
        $region30: #{tpu_custom_call.1} parent=27 // pred_check_branch
          %157 = sbr.rel (%p155) target = $region32
        $region31: #{tpu_custom_call.1} parent=27 // pred_region
          %158 = dma.done %s151, 128
        $region32: #{tpu_custom_call.1} parent=27 // pred_fallthru
          _
        %s159 = sand.u32 %s38, 1
        %s160 = scalar_lea.sflag [#allocation3], %s159
        %s161 = sand.u32 %s38, 1
        %s162 = smul.addr %s161, 8
        %s163 = scalar_lea.vmem [#allocation2], %s162
        %p164 = pneg %p51
        %p165 = pneg %p48
        %p166 = pneg %p72
        %p167 = pneg %p69
        %p168 = pneg %p100
        %p169 = pneg %p97
        %p170 = scmp.lt.s32.totalorder %s20, 1
        %s171 = scalar_select %p170, %s20, 1
        %p172 = scmp.lt.s32.totalorder %s21, 0
        %s173 = scalar_select %p172, %s21, 0
        %s174 = sadd.s32 %s173, %s171
        %s175 = smul.addr %s174, 8
        %s176 = scalar_lea.vmem %s2, %s175
        %s177 = smul.u32 2, %s21
        %p178 = scmp.lt.s32.totalorder %s20, 1
        %s179 = scalar_select %p178, %s20, 1
        %p180 = scmp.lt.s32.totalorder %s21, 0
        %s181 = scalar_select %p180, %s21, 0
        %s182 = sadd.s32 %s181, %s179
        %s183 = smul.addr %s182, 8
        %s184 = scalar_lea.vmem %s2, %s183
        %v185 = vld [vmem:[%s1] sm:$0xff]
        %v186 = vld [vmem:[%s154] sm:$0xff]
        %v188 = vcombine.high %v186, %v186
        %vm189 = vcmask 31744
        %v191 = vsel %vm189, %v185, 0
        %vm193 = vcmask 1043456
        %v194 = vsel %vm193, %v186, 0
        %v196 = vsel %vm193, %v188, 0
        %198 = vmatprep.subr.mxu0 %v196
        %199 = vmatpush1.msra.mxu0 %v194
        %200 = vmatprep.subr.mxu0 0.0
        %201 = vmatpush1.msra.mxu0 0.0
        %202 = vmatprep.subr.mxu0 0.0
        %203 = vmatpush1.msra.mxu0 0.0
        %204 = vmatprep.subr.mxu0 0.0
        %205 = vmatpush1.msra.mxu0 0.0
        %206 = vmatprep.subr.mxu0 0.0
        %207 = vmatpush1.msra.mxu0 0.0
        %208 = vmatprep.subr.mxu0 0.0
        %209 = vmatpush1.msra.mxu0 0.0
        %210 = vmatprep.subr.mxu0 0.0
        %211 = vmatpush1.msra.mxu0 0.0
        %212 = vmatprep.subr.mxu0 0.0
        %213 = vmatpush1.msra.mxu0 0.0
        %214 = vmatprep.subr.mxu0 0.0
        %215 = vmatpush1.msra.mxu0 0.0
        %216 = vmatprep.subr.mxu0 0.0
        %217 = vmatpush1.msra.mxu0 0.0
        %218 = vmatprep.subr.mxu0 0.0
        %219 = vmatpush1.msra.mxu0 0.0
        %220 = vmatprep.subr.mxu0 0.0
        %221 = vmatpush1.msra.mxu0 0.0
        %222 = vmatprep.subr.mxu0 0.0
        %223 = vmatpush1.msra.mxu0 0.0
        %224 = vmatprep.subr.mxu0 0.0
        %225 = vmatpush1.msra.mxu0 0.0
        %226 = vmatprep.subr.mxu0 0.0
        %227 = vmatpush1.msra.mxu0 0.0
        %228 = vmatprep.subr.mxu0 0.0
        %229 = vmatpush1.msra.mxu0 0.0
        %230 = vmatprep.subr.mxu0 0.0
        %231 = vmatpush1.msra.mxu0 0.0
        %232 = vmatprep.subr.mxu0 0.0
        %233 = vmatpush1.msra.mxu0 0.0
        %234 = vmatprep.subr.mxu0 0.0
        %235 = vmatpush1.msra.mxu0 0.0
        %236 = vmatprep.subr.mxu0 0.0
        %237 = vmatpush1.msra.mxu0 0.0
        %238 = vmatprep.subr.mxu0 0.0
        %239 = vmatpush1.msra.mxu0 0.0
        %240 = vmatprep.subr.mxu0 0.0
        %241 = vmatpush1.msra.mxu0 0.0
        %242 = vmatprep.subr.mxu0 0.0
        %243 = vmatpush1.msra.mxu0 0.0
        %244 = vmatprep.subr.mxu0 0.0
        %245 = vmatpush1.msra.mxu0 0.0
        %246 = vmatprep.subr.mxu0 0.0
        %247 = vmatpush1.msra.mxu0 0.0
        %248 = vmatprep.subr.mxu0 0.0
        %249 = vmatpush1.msra.mxu0 0.0
        %250 = vmatprep.subr.mxu0 0.0
        %251 = vmatpush1.msra.mxu0 0.0
        %252 = vmatprep.subr.mxu0 0.0
        %253 = vmatpush1.msra.mxu0 0.0
        %254 = vmatprep.subr.mxu0 0.0
        %255 = vmatpush1.msra.mxu0 0.0
        %256 = vmatprep.subr.mxu0 0.0
        %257 = vmatpush1.msra.mxu0 0.0
        %258 = vmatprep.subr.mxu0 0.0
        %259 = vmatpush1.msra.mxu0 0.0
        %260 = vmatprep.subr.mxu0 0.0
        %261 = vmatpush1.msra.mxu0 0.0
        %262 = vmatprep.mubr.f32.mxu0 0.0
        %263 = vmatmul.mubr.f32.gmra.mrb[0].mxu0 %v191
        %v264 = vpop.f32.mrb[0].mxu0
        %v265 = vadd.f32 0.0, %v264
        %v266 = vpop.f32.mrb[0].mxu0
        %v267 = vadd.f32 0.0, %v266
        %268 = vdwg.mxu0
        %v269 = vadd.f32 %v265, %v267
        %270 = vadd.xlane.f32.xlu0 %v269
        %v271 = vpop.xlane.xlu0 %270
        %v272 = vmul.f32 %v265, %v265
        %v273 = vmul.f32 %v267, %v267
        %v274 = vadd.f32 %v272, %v273
        %275 = vadd.xlane.f32.xlu0 %v274
        %v276 = vpop.xlane.xlu0 %275
        %vm277 = vcmask 7168
        %v278 = vsel %vm277, %v271, %v276
        %vm279 = vcmask 15360
        %280 = vst.msk [vmem:[%s184] sm:$0xff] %vm279, %v278
        %p281 = scmp.lt.s32.totalorder %s20, 1
        %s282 = scalar_select %p281, %s20, 1
        %p283 = scmp.lt.s32.totalorder %s21, 0
        %s284 = scalar_select %p283, %s21, 0
        %s285 = sadd.s32 %s284, %s282
        %s286 = smul.addr %s285, 8
        %s287 = scalar_lea.vmem %s2, %s286
        // Predicated region
        $region33: #{tpu_custom_call.1} parent=27 // pred_check
          %p288 = pneg %p97
        $region34: #{tpu_custom_call.1} parent=27 // pred_check_branch
          %290 = sbr.rel (%p288) target = $region36
        $region35: #{tpu_custom_call.1} parent=27 // pred_region
          _
        $region36: #{tpu_custom_call.1} parent=27 // pred_fallthru
          _
      $region28: #{tpu_custom_call.1} parent=5 // pred_fallthru
        _
      %p291 = scmp.le.s32.totalorder 2, %s11
      // Predicated region
      $region37: #{tpu_custom_call.1} parent=5 // pred_check
        %p292 = pneg %p291
      $region38: #{tpu_custom_call.1} parent=5 // pred_check_branch
        %294 = sbr.rel (%p292) target = $region40
      $region39: #{tpu_custom_call.1} parent=5 // pred_region
        %s295 = ssub.s32 %s11, 2
        // Predicated region
        $region41: #{tpu_custom_call.1} parent=39 // pred_check
          %p296 = pneg %p103
        $region42: #{tpu_custom_call.1} parent=39 // pred_check_branch
          %298 = sbr.rel (%p296) target = $region44
        $region43: #{tpu_custom_call.1} parent=39 // pred_region
          %p299 = scmp.lt.s32.totalorder %s22, 1
          %s300 = scalar_select %p299, %s22, 1
          %p301 = scmp.lt.s32.totalorder %s23, 0
          %s302 = scalar_select %p301, %s23, 0
          %s303 = sadd.s32 %s302, %s300
          %s304 = smul.addr %s303, 8
          %s305 = scalar_lea.vmem %s2, %s304
        $region44: #{tpu_custom_call.1} parent=39 // pred_fallthru
          _
      $region40: #{tpu_custom_call.1} parent=5 // pred_fallthru
        _
    $region6: #{tpu_custom_call.1} parent=1 // loop_footer
      %s15 = sadd.s32 1, %s11
    $region7: #{tpu_custom_call.1} parent=1 // loop_footer_branch
      %10 = sbr.rel target = $region3
    $region8: #{tpu_custom_call.1} parent=1 // loop_exit
      _
    %306 = vsyncpa [#allocation3], 1
    %s307 = scalar_lea.sflag [#allocation3], 1
    %308 = vsyncpa %s307, 1

</llo_original>
